<compile_context>
chip_gen: v7x
topology: tpu7x:2x2x1
jax: 0.10.0
libtpu: 0.0.40
codegen_flags: <defaults>
</compile_context>

<pallas_src>
import jax
import jax.numpy as jnp
from jax.experimental import pallas as pl
from jax.experimental.pallas import tpu as pltpu


def _round_up(v: int, m: int) -> int:
    return (v + m - 1) // m * m


def _make_se_kernel(rec: int, hw_true: int):
    inv_hw = 1.0 / float(hw_true)

    def se_kernel(x_ref, w1_ref, b1_ref, w2_ref, b2_ref, o_ref):
        # x_ref : (1, C_pad, HW_pad)   one batch element (zero-padded)
        # w1_ref: (Ch, C_pad)  b1_ref: (Ch, 1)      (torch fc1.weight layout)
        # w2_ref: (C_pad, Ch)  b2_ref: (C_pad, 1)   (torch fc2.weight layout)
        x = x_ref[0]                      # (C_pad, HW_pad)
        w1 = w1_ref[...]
        b1 = b1_ref[...]
        w2 = w2_ref[...]
        b2 = b2_ref[...]

        # Single global average pool over the TRUE spatial extent
        # (padded columns are zero, so the sum is unaffected).
        y = jnp.sum(x, axis=-1, keepdims=True) * inv_hw      # (C_pad, 1)

        # Recursion lives entirely on the tiny pooled vector:
        #   scale_acc = prod_i s_i ,  y <- y * s_i  (== mean of the rescaled tensor)
        scale_acc = jnp.ones_like(y)                          # (C_pad, 1)
        for _ in range(rec):                                  # rec is static -> unrolled
            h = jnp.dot(w1, y, preferred_element_type=jnp.float32) + b1   # (Ch, 1)
            h = jnp.maximum(h, 0.0)
            s = jax.nn.sigmoid(
                jnp.dot(w2, h, preferred_element_type=jnp.float32) + b2)  # (C_pad, 1)
            scale_acc = scale_acc * s
            y = y * s

        # Single full-tensor rescale (lane-broadcast of the per-channel scale).
        o_ref[0] = x * scale_acc

    return se_kernel


def recursive_squeeze_excite(x_nchw, w1, b1, w2, b2, *, rec=3):
    """x_nchw: (B, C, H, W) float32.
       Weights in torch.nn.Linear layout:
         w1: (Ch, C) = fc1.weight, b1: (Ch,), w2: (C, Ch) = fc2.weight, b2: (C,)."""
    B, C, H, W = x_nchw.shape
    HW = H * W
    Ch = w1.shape[0]

    # Pad channels to a sublane multiple (8) and spatial to a lane multiple (128)
    # so blocks are (8,128)-aligned and stores are lane-dense (no masked vst).
    C_pad = _round_up(C, 8)
    HW_pad = _round_up(HW, 128)

    x3 = x_nchw.reshape(B, C, HW)
    if C_pad != C or HW_pad != HW:
        x3 = jnp.pad(x3, ((0, 0), (0, C_pad - C), (0, HW_pad - HW)))

    w1p = jnp.pad(w1, ((0, 0), (0, C_pad - C)))               # (Ch, C_pad)
    w2p = jnp.pad(w2, ((0, C_pad - C), (0, 0)))               # (C_pad, Ch)
    b1c = b1.reshape(Ch, 1)                                   # (Ch, 1)
    b2c = jnp.pad(b2, (0, C_pad - C)).reshape(C_pad, 1)       # (C_pad, 1)

    # Explicit VMEM budget: 2 arrays (in+out) x 2 buffers x one (1, C_pad, HW_pad) block.
    block_bytes = C_pad * HW_pad * 4
    vmem_limit = int(max(32 * 1024 * 1024, min(6 * block_bytes + (1 << 20),
                                               100 * 1024 * 1024)))

    out3 = pl.pallas_call(
        _make_se_kernel(rec, HW),
        out_shape=jax.ShapeDtypeStruct((B, C_pad, HW_pad), x3.dtype),
        grid=(B,),
        in_specs=[
            pl.BlockSpec((1, C_pad, HW_pad), lambda b: (b, 0, 0)),   # x: one sample/step
            pl.BlockSpec((Ch, C_pad), lambda b: (0, 0)),             # w1: resident
            pl.BlockSpec((Ch, 1), lambda b: (0, 0)),                 # b1: resident
            pl.BlockSpec((C_pad, Ch), lambda b: (0, 0)),             # w2: resident
            pl.BlockSpec((C_pad, 1), lambda b: (0, 0)),              # b2: resident
        ],
        out_specs=pl.BlockSpec((1, C_pad, HW_pad), lambda b: (b, 0, 0)),
        compiler_params=pltpu.CompilerParams(
            dimension_semantics=("parallel",),   # megacore sharding on v7x
            vmem_limit_bytes=vmem_limit,
        ),
    )(x3, w1p, b1c, w2p, b2c)

    return out3[:, :C, :HW].reshape(B, C, H, W)


def _reference(x, w1, b1, w2, b2, rec=3):
    # Literal translation of the PyTorch forward (torch.nn.Linear: y @ W.T + b).
    out = x
    for _ in range(rec):
        y = jnp.mean(out, axis=(2, 3))                        # (B, C)
        h = jnp.maximum(y @ w1.T + b1, 0.0)                   # (B, Ch)
        s = jax.nn.sigmoid(h @ w2.T + b2)                     # (B, C)
        out = out * s[:, :, None, None]
    return out


if __name__ == "__main__":
    # Shapes consistent with the module: in_features = C = 64, reduction = 16, rec = 3
    B, C, H, W = 2, 64, 8, 8
    reduction = 16
    rec = 3
    Ch = C // reduction  # hidden = 4

    key = jax.random.PRNGKey(0)
    kx, k1, kb1, k2, kb2 = jax.random.split(key, 5)

    x = jax.random.normal(kx, (B, C, H, W), dtype=jnp.float32)
    # Parameters in torch.nn.Linear layout (out_features, in_features)
    w1 = jax.random.normal(k1, (Ch, C), dtype=jnp.float32) * 0.1
    b1 = jax.random.normal(kb1, (Ch,), dtype=jnp.float32) * 0.1
    w2 = jax.random.normal(k2, (C, Ch), dtype=jnp.float32) * 0.1
    b2 = jax.random.normal(kb2, (C,), dtype=jnp.float32) * 0.1

    out = recursive_squeeze_excite(x, w1, b1, w2, b2, rec=rec)
    out = jax.block_until_ready(out)

    ref = _reference(x, w1, b1, w2, b2, rec=rec)
    assert jnp.allclose(out, ref, atol=2e-5, rtol=2e-5), "mismatch vs JAX reference"

    print("KERNEL_OK")
</pallas_src>

<mosaic_0001>
module attributes {stable_mosaic.version = 11 : i64} {
  func.func @se_kernel(%arg0: i32, %arg1: memref<1x64x128xf32, #tpu.memory_space<vmem>>, %arg2: memref<4x64xf32, #tpu.memory_space<vmem>>, %arg3: memref<4x1xf32, #tpu.memory_space<vmem>>, %arg4: memref<64x4xf32, #tpu.memory_space<vmem>>, %arg5: memref<64x1xf32, #tpu.memory_space<vmem>>, %arg6: memref<1x64x128xf32, #tpu.memory_space<vmem>>) attributes {dimension_semantics = [#tpu.dimension_semantics<parallel>], iteration_bounds = array<i64: 2>, scalar_prefetch = 0 : i64, scratch_operands = 0 : i64, tpu.core_type = #tpu.core_type<tc>, window_params = [{transform_indices = @transform_0, window_bounds = array<i64: 1, 64, 128>}, {pipeline_mode = #tpu.pipeline_mode<synchronous>, transform_indices = @transform_1, window_bounds = array<i64: 4, 64>}, {pipeline_mode = #tpu.pipeline_mode<synchronous>, transform_indices = @transform_2, window_bounds = array<i64: 4, 1>}, {pipeline_mode = #tpu.pipeline_mode<synchronous>, transform_indices = @transform_3, window_bounds = array<i64: 64, 4>}, {pipeline_mode = #tpu.pipeline_mode<synchronous>, transform_indices = @transform_4, window_bounds = array<i64: 64, 1>}, {transform_indices = @transform_5, window_bounds = array<i64: 1, 64, 128>}]} {
    %c0 = arith.constant 0 : index
    %c0_0 = arith.constant 0 : index
    %c0_1 = arith.constant 0 : index
    %0 = vector.load %arg1[%c0, %c0_0, %c0_1] : memref<1x64x128xf32, #tpu.memory_space<vmem>>, vector<1x64x128xf32>
    %1 = vector.shape_cast %0 : vector<1x64x128xf32> to vector<64x128xf32>
    %c0_2 = arith.constant 0 : index
    %c0_3 = arith.constant 0 : index
    %2 = vector.load %arg2[%c0_2, %c0_3] : memref<4x64xf32, #tpu.memory_space<vmem>>, vector<4x64xf32>
    %c0_4 = arith.constant 0 : index
    %c0_5 = arith.constant 0 : index
    %3 = vector.load %arg3[%c0_4, %c0_5] : memref<4x1xf32, #tpu.memory_space<vmem>>, vector<4x1xf32>
    %c0_6 = arith.constant 0 : index
    %c0_7 = arith.constant 0 : index
    %4 = vector.load %arg4[%c0_6, %c0_7] : memref<64x4xf32, #tpu.memory_space<vmem>>, vector<64x4xf32>
    %c0_8 = arith.constant 0 : index
    %c0_9 = arith.constant 0 : index
    %5 = vector.load %arg5[%c0_8, %c0_9] : memref<64x1xf32, #tpu.memory_space<vmem>>, vector<64x1xf32>
    %cst = arith.constant dense<0.000000e+00> : vector<64xf32>
    %6 = vector.multi_reduction <add>, %1, %cst [1] : vector<64x128xf32> to vector<64xf32>
    %7 = vector.shape_cast %6 : vector<64xf32> to vector<64x1xf32>
    %cst_10 = arith.constant 1.562500e-02 : f32
    %8 = vector.broadcast %cst_10 : f32 to vector<64x1xf32>
    %9 = arith.mulf %7, %8 : vector<64x1xf32>
    %cst_11 = arith.constant 1.000000e+00 : f32
    %10 = vector.broadcast %cst_11 : f32 to vector<64x1xf32>
    %cst_12 = arith.constant dense<0.000000e+00> : vector<4x1xf32>
    %11 = tpu.matmul %2, %9, %cst_12 {dimension_numbers = #tpu.dot_dimension_numbers<[1], [0], [0], [1], [0, 0, 1, 1], [], []>} : vector<4x64xf32>, vector<64x1xf32>, vector<4x1xf32> -> vector<4x1xf32>
    %12 = arith.addf %11, %3 : vector<4x1xf32>
    %cst_13 = arith.constant 0.000000e+00 : f32
    %13 = vector.broadcast %cst_13 : f32 to vector<4x1xf32>
    %14 = arith.maximumf %12, %13 : vector<4x1xf32>
    %cst_14 = arith.constant dense<0.000000e+00> : vector<64x1xf32>
    %15 = tpu.matmul %4, %14, %cst_14 {dimension_numbers = #tpu.dot_dimension_numbers<[1], [0], [0], [1], [0, 0, 1, 1], [], []>} : vector<64x4xf32>, vector<4x1xf32>, vector<64x1xf32> -> vector<64x1xf32>
    %16 = arith.addf %15, %5 : vector<64x1xf32>
    %17 = arith.negf %16 : vector<64x1xf32>
    %18 = math.exp %17 : vector<64x1xf32>
    %cst_15 = arith.constant 1.000000e+00 : f32
    %19 = vector.broadcast %cst_15 : f32 to vector<64x1xf32>
    %20 = arith.addf %19, %18 : vector<64x1xf32>
    %21 = arith.divf %19, %20 : vector<64x1xf32>
    %22 = arith.mulf %10, %21 : vector<64x1xf32>
    %23 = arith.mulf %9, %21 : vector<64x1xf32>
    %cst_16 = arith.constant dense<0.000000e+00> : vector<4x1xf32>
    %24 = tpu.matmul %2, %23, %cst_16 {dimension_numbers = #tpu.dot_dimension_numbers<[1], [0], [0], [1], [0, 0, 1, 1], [], []>} : vector<4x64xf32>, vector<64x1xf32>, vector<4x1xf32> -> vector<4x1xf32>
    %25 = arith.addf %24, %3 : vector<4x1xf32>
    %cst_17 = arith.constant 0.000000e+00 : f32
    %26 = vector.broadcast %cst_17 : f32 to vector<4x1xf32>
    %27 = arith.maximumf %25, %26 : vector<4x1xf32>
    %cst_18 = arith.constant dense<0.000000e+00> : vector<64x1xf32>
    %28 = tpu.matmul %4, %27, %cst_18 {dimension_numbers = #tpu.dot_dimension_numbers<[1], [0], [0], [1], [0, 0, 1, 1], [], []>} : vector<64x4xf32>, vector<4x1xf32>, vector<64x1xf32> -> vector<64x1xf32>
    %29 = arith.addf %28, %5 : vector<64x1xf32>
    %30 = arith.negf %29 : vector<64x1xf32>
    %31 = math.exp %30 : vector<64x1xf32>
    %cst_19 = arith.constant 1.000000e+00 : f32
    %32 = vector.broadcast %cst_19 : f32 to vector<64x1xf32>
    %33 = arith.addf %32, %31 : vector<64x1xf32>
    %34 = arith.divf %32, %33 : vector<64x1xf32>
    %35 = arith.mulf %22, %34 : vector<64x1xf32>
    %36 = arith.mulf %23, %34 : vector<64x1xf32>
    %cst_20 = arith.constant dense<0.000000e+00> : vector<4x1xf32>
    %37 = tpu.matmul %2, %36, %cst_20 {dimension_numbers = #tpu.dot_dimension_numbers<[1], [0], [0], [1], [0, 0, 1, 1], [], []>} : vector<4x64xf32>, vector<64x1xf32>, vector<4x1xf32> -> vector<4x1xf32>
    %38 = arith.addf %37, %3 : vector<4x1xf32>
    %cst_21 = arith.constant 0.000000e+00 : f32
    %39 = vector.broadcast %cst_21 : f32 to vector<4x1xf32>
    %40 = arith.maximumf %38, %39 : vector<4x1xf32>
    %cst_22 = arith.constant dense<0.000000e+00> : vector<64x1xf32>
    %41 = tpu.matmul %4, %40, %cst_22 {dimension_numbers = #tpu.dot_dimension_numbers<[1], [0], [0], [1], [0, 0, 1, 1], [], []>} : vector<64x4xf32>, vector<4x1xf32>, vector<64x1xf32> -> vector<64x1xf32>
    %42 = arith.addf %41, %5 : vector<64x1xf32>
    %43 = arith.negf %42 : vector<64x1xf32>
    %44 = math.exp %43 : vector<64x1xf32>
    %cst_23 = arith.constant 1.000000e+00 : f32
    %45 = vector.broadcast %cst_23 : f32 to vector<64x1xf32>
    %46 = arith.addf %45, %44 : vector<64x1xf32>
    %47 = arith.divf %45, %46 : vector<64x1xf32>
    %48 = arith.mulf %35, %47 : vector<64x1xf32>
    %49 = vector.broadcast %48 : vector<64x1xf32> to vector<64x128xf32>
    %50 = arith.mulf %1, %49 : vector<64x128xf32>
    %c0_24 = arith.constant 0 : index
    %c0_25 = arith.constant 0 : index
    %c0_26 = arith.constant 0 : index
    %51 = vector.load %arg6[%c0_24, %c0_25, %c0_26] : memref<1x64x128xf32, #tpu.memory_space<vmem>>, vector<1x64x128xf32>
    %52 = vector.shape_cast %51 : vector<1x64x128xf32> to vector<64x128xf32>
    %53 = vector.shape_cast %50 : vector<64x128xf32> to vector<1x64x128xf32>
    tpu.vector_store %arg6[%c0_24, %c0_25, %c0_26], %53 {strides = array<i32>} : memref<1x64x128xf32, #tpu.memory_space<vmem>>, vector<1x64x128xf32>,
    return
  }
  func.func @transform_0(%arg0: i32) -> (i32, i32, i32) {
    %c0_i32 = arith.constant 0 : i32
    %c0_i32_0 = arith.constant 0 : i32
    %c0_i32_1 = arith.constant 0 : i32
    return %arg0, %c0_i32, %c0_i32_0 : i32, i32, i32
  }
  func.func @transform_1(%arg0: i32) -> (i32, i32) {
    %c0_i32 = arith.constant 0 : i32
    %c0_i32_0 = arith.constant 0 : i32
    %c0_i32_1 = arith.constant 0 : i32
    return %c0_i32, %c0_i32_0 : i32, i32
  }
  func.func @transform_2(%arg0: i32) -> (i32, i32) {
    %c0_i32 = arith.constant 0 : i32
    %c0_i32_0 = arith.constant 0 : i32
    %c0_i32_1 = arith.constant 0 : i32
    return %c0_i32, %c0_i32_0 : i32, i32
  }
  func.func @transform_3(%arg0: i32) -> (i32, i32) {
    %c0_i32 = arith.constant 0 : i32
    %c0_i32_0 = arith.constant 0 : i32
    %c0_i32_1 = arith.constant 0 : i32
    return %c0_i32, %c0_i32_0 : i32, i32
  }
  func.func @transform_4(%arg0: i32) -> (i32, i32) {
    %c0_i32 = arith.constant 0 : i32
    %c0_i32_0 = arith.constant 0 : i32
    %c0_i32_1 = arith.constant 0 : i32
    return %c0_i32, %c0_i32_0 : i32, i32
  }
  func.func @transform_5(%arg0: i32) -> (i32, i32, i32) {
    %c0_i32 = arith.constant 0 : i32
    %c0_i32_0 = arith.constant 0 : i32
    %c0_i32_1 = arith.constant 0 : i32
    return %arg0, %c0_i32, %c0_i32_0 : i32, i32, i32
  }
}

</mosaic_0001>

<llo_original>
// kernel: tpu_custom_call.1
$region0: #{tpu_custom_call.1}
  #allocation0 [shape = 'u32[]', space=smem, size = 0x4, offset = 0x4, fixed_abs, tag = 'smem constant byte address 0x4 - core index']
  #allocation1 [shape = 'u32[144,128]{1,0:T(1,128)}', space=vmem, size = 0x12000, scoped, tag = 'internal scratch']
  %s0 = inlined_call_operand.vmem [shape: f32[2,64,128], index: 0, kind: input, shape index: {}]
  %s1 = inlined_call_operand.vmem [shape: f32[4,64], index: 1, kind: input, shape index: {}]
  %s2 = inlined_call_operand.vmem [shape: f32[4,1], index: 2, kind: input, shape index: {}]
  %s3 = inlined_call_operand.vmem [shape: f32[64,4], index: 3, kind: input, shape index: {}]
  %s4 = inlined_call_operand.vmem [shape: f32[64,1], index: 4, kind: input, shape index: {}]
  %s5 = inlined_call_operand.hbm [shape: f32[2,64,128], index: 5, kind: output, shape index: {}]
  %s6 = sld [smem:[#allocation0]]
  $region53: #{tpu_custom_call.1} parent=0
    _
  %s8 = ssub.s32 1, %s6
  %s9 = scalar_select 0, %s8, %s6
  $region1: #{tpu_custom_call.1} parent=0
    #allocation2 [shape = 'u8[65536]{0}', space=vmem, size = 0x10000, scoped, tag = 'output window, operand 0']
    #allocation3 [shape = 's32[2]{0}', space=sflag, size = 0x8, scoped, tag = 'scoped memory for tpu_custom_call.1']
    %10 = vsyncpa [#allocation3], 0
    %s11 = scalar_lea.sflag [#allocation3], 1
    %12 = vsyncpa %s11, 0
    loop: start=0, step=1, limit=4
    $region2: #{tpu_custom_call.1} parent=1 // loop_pre_header
      _
    $region3: #{tpu_custom_call.1} parent=1 // loop_header
      %s14 = sphi 0, %s18
      %p15 = scmp.ge.s32.totalorder %s14, 4
      %s24 = sphi 0, %s26
      %s27 = sphi 0, %s24
      %s28 = sphi 0, %s27
      %s44 = sphi 0, %s28
      %s48 = sphi 0, %s48
      %s50 = sphi 0, %s48
      %s51 = sphi 0, %s50
      %s65 = sphi 0, %s51
      %s69 = sphi 0, %s69
      %s71 = sphi 0, %s69
      %s72 = sphi 0, %s71
      %s86 = sphi 0, %s72
      %s90 = sphi 0, %s90
      %s92 = sphi 0, %s90
      %s93 = sphi 0, %s92
      %s107 = sphi 0, %s93
      %s111 = sphi 0, %s111
      %s113 = sphi 0, %s111
      %s114 = sphi 0, %s113
      %s128 = sphi 0, %s114
      %s134 = sphi 0, %s136
      %s137 = sphi 0, %s134
      %s138 = sphi 0, %s137
      %s154 = sphi 0, %s138
    $region4: #{tpu_custom_call.1} parent=1 // loop_header_branch
      %17 = sbr.rel (%p15) target = $region8
    $region5: #{tpu_custom_call.1} parent=1 // loop_body
      %s19 = ssub.s32 %s14, 1
      %s20 = ssub.s32 %s14, 2
      %s21 = sadd.s32 %s14, 1
      %s22 = ssub.s32 %s14, %s21
      %p23 = scmp.eq.s32.totalorder %s22, 0
      %s25 = sadd.s32 %s24, 1
      %s26 = scalar_select %p23, %s24, %s25
      %p29 = pneg %p23
      %p30 = scmp.eq.s32.totalorder %s14, 1
      %p31 = por %p29, %p30
      %p32 = scmp.ne.s32.totalorder %s24, %s27
      %p33 = scmp.eq.s32.totalorder %s14, 0
      %p34 = por %p32, %p33
      %p35 = scmp.ne.s32.totalorder %s24, %s27
      %p36 = scmp.eq.s32.totalorder %s19, 1
      %p37 = por %p35, %p36
      %p38 = scmp.ne.s32.totalorder %s27, %s28
      %p39 = scmp.eq.s32.totalorder %s19, 0
      %p40 = por %p38, %p39
      %p41 = scmp.ne.s32.totalorder %s27, %s28
      %p42 = scmp.eq.s32.totalorder %s20, 1
      %p43 = por %p41, %p42
      %p45 = scmp.ne.s32.totalorder %s28, %s44
      %p46 = scmp.eq.s32.totalorder %s20, 0
      %p47 = por %p45, %p46
      %s49 = sadd.s32 %s48, 1
      %p52 = scmp.eq.s32.totalorder %s14, 1
      %p53 = scmp.ne.s32.totalorder %s48, %s50
      %p54 = scmp.eq.s32.totalorder %s14, 0
      %p55 = por %p53, %p54
      %p56 = scmp.ne.s32.totalorder %s48, %s50
      %p57 = scmp.eq.s32.totalorder %s19, 1
      %p58 = por %p56, %p57
      %p59 = scmp.ne.s32.totalorder %s50, %s51
      %p60 = scmp.eq.s32.totalorder %s19, 0
      %p61 = por %p59, %p60
      %p62 = scmp.ne.s32.totalorder %s50, %s51
      %p63 = scmp.eq.s32.totalorder %s20, 1
      %p64 = por %p62, %p63
      %p66 = scmp.ne.s32.totalorder %s51, %s65
      %p67 = scmp.eq.s32.totalorder %s20, 0
      %p68 = por %p66, %p67
      %s70 = sadd.s32 %s69, 1
      %p73 = scmp.eq.s32.totalorder %s14, 1
      %p74 = scmp.ne.s32.totalorder %s69, %s71
      %p75 = scmp.eq.s32.totalorder %s14, 0
      %p76 = por %p74, %p75
      %p77 = scmp.ne.s32.totalorder %s69, %s71
      %p78 = scmp.eq.s32.totalorder %s19, 1
      %p79 = por %p77, %p78
      %p80 = scmp.ne.s32.totalorder %s71, %s72
      %p81 = scmp.eq.s32.totalorder %s19, 0
      %p82 = por %p80, %p81
      %p83 = scmp.ne.s32.totalorder %s71, %s72
      %p84 = scmp.eq.s32.totalorder %s20, 1
      %p85 = por %p83, %p84
      %p87 = scmp.ne.s32.totalorder %s72, %s86
      %p88 = scmp.eq.s32.totalorder %s20, 0
      %p89 = por %p87, %p88
      %s91 = sadd.s32 %s90, 1
      %p94 = scmp.eq.s32.totalorder %s14, 1
      %p95 = scmp.ne.s32.totalorder %s90, %s92
      %p96 = scmp.eq.s32.totalorder %s14, 0
      %p97 = por %p95, %p96
      %p98 = scmp.ne.s32.totalorder %s90, %s92
      %p99 = scmp.eq.s32.totalorder %s19, 1
      %p100 = por %p98, %p99
      %p101 = scmp.ne.s32.totalorder %s92, %s93
      %p102 = scmp.eq.s32.totalorder %s19, 0
      %p103 = por %p101, %p102
      %p104 = scmp.ne.s32.totalorder %s92, %s93
      %p105 = scmp.eq.s32.totalorder %s20, 1
      %p106 = por %p104, %p105
      %p108 = scmp.ne.s32.totalorder %s93, %s107
      %p109 = scmp.eq.s32.totalorder %s20, 0
      %p110 = por %p108, %p109
      %s112 = sadd.s32 %s111, 1
      %p115 = scmp.eq.s32.totalorder %s14, 1
      %p116 = scmp.ne.s32.totalorder %s111, %s113
      %p117 = scmp.eq.s32.totalorder %s14, 0
      %p118 = por %p116, %p117
      %p119 = scmp.ne.s32.totalorder %s111, %s113
      %p120 = scmp.eq.s32.totalorder %s19, 1
      %p121 = por %p119, %p120
      %p122 = scmp.ne.s32.totalorder %s113, %s114
      %p123 = scmp.eq.s32.totalorder %s19, 0
      %p124 = por %p122, %p123
      %p125 = scmp.ne.s32.totalorder %s113, %s114
      %p126 = scmp.eq.s32.totalorder %s20, 1
      %p127 = por %p125, %p126
      %p129 = scmp.ne.s32.totalorder %s114, %s128
      %p130 = scmp.eq.s32.totalorder %s20, 0
      %p131 = por %p129, %p130
      %s132 = ssub.s32 %s14, %s21
      %p133 = scmp.eq.s32.totalorder %s132, 0
      %s135 = sadd.s32 %s134, 1
      %s136 = scalar_select %p133, %s134, %s135
      %p139 = pneg %p133
      %p140 = scmp.eq.s32.totalorder %s14, 1
      %p141 = por %p139, %p140
      %p142 = scmp.ne.s32.totalorder %s134, %s137
      %p143 = scmp.eq.s32.totalorder %s14, 0
      %p144 = por %p142, %p143
      %p145 = scmp.ne.s32.totalorder %s134, %s137
      %p146 = scmp.eq.s32.totalorder %s19, 1
      %p147 = por %p145, %p146
      %p148 = scmp.ne.s32.totalorder %s137, %s138
      %p149 = scmp.eq.s32.totalorder %s19, 0
      %p150 = por %p148, %p149
      %p151 = scmp.ne.s32.totalorder %s137, %s138
      %p152 = scmp.eq.s32.totalorder %s20, 1
      %p153 = por %p151, %p152
      %p155 = scmp.ne.s32.totalorder %s138, %s154
      %p156 = scmp.eq.s32.totalorder %s20, 0
      %p157 = por %p155, %p156
      %p158 = scmp.le.s32.totalorder 1, %s14
      %p159 = scmp.lt.s32.totalorder %s14, 3
      %p160 = pnand %p158, %p159
      %p161 = pneg %p160
      // Predicated region
      $region9: #{tpu_custom_call.1} parent=5 // pred_check
        _
      $region10: #{tpu_custom_call.1} parent=5 // pred_check_branch
        %163 = sbr.rel (%p160) target = $region12
      $region11: #{tpu_custom_call.1} parent=5 // pred_region
        %s164 = ssub.s32 %s14, 1
        // Predicated region
        $region13: #{tpu_custom_call.1} parent=11 // pred_check
          %p165 = pneg %p61
        $region14: #{tpu_custom_call.1} parent=11 // pred_check_branch
          %167 = sbr.rel (%p165) target = $region16
        $region15: #{tpu_custom_call.1} parent=11 // pred_region
          _
        $region16: #{tpu_custom_call.1} parent=11 // pred_fallthru
          _
        // Predicated region
        $region17: #{tpu_custom_call.1} parent=11 // pred_check
          %p168 = pneg %p82
        $region18: #{tpu_custom_call.1} parent=11 // pred_check_branch
          %170 = sbr.rel (%p168) target = $region20
        $region19: #{tpu_custom_call.1} parent=11 // pred_region
          _
        $region20: #{tpu_custom_call.1} parent=11 // pred_fallthru
          _
        // Predicated region
        $region21: #{tpu_custom_call.1} parent=11 // pred_check
          %p171 = pneg %p103
        $region22: #{tpu_custom_call.1} parent=11 // pred_check_branch
          %173 = sbr.rel (%p171) target = $region24
        $region23: #{tpu_custom_call.1} parent=11 // pred_region
          _
        $region24: #{tpu_custom_call.1} parent=11 // pred_fallthru
          _
        // Predicated region
        $region25: #{tpu_custom_call.1} parent=11 // pred_check
          %p174 = pneg %p124
        $region26: #{tpu_custom_call.1} parent=11 // pred_check_branch
          %176 = sbr.rel (%p174) target = $region28
        $region27: #{tpu_custom_call.1} parent=11 // pred_region
          _
        $region28: #{tpu_custom_call.1} parent=11 // pred_fallthru
          _
      $region12: #{tpu_custom_call.1} parent=5 // pred_fallthru
        _
      %p177 = scmp.lt.s32.totalorder %s14, 2
      // Predicated region
      $region29: #{tpu_custom_call.1} parent=5 // pred_check
        %p178 = pneg %p177
      $region30: #{tpu_custom_call.1} parent=5 // pred_check_branch
        %180 = sbr.rel (%p178) target = $region32
      $region31: #{tpu_custom_call.1} parent=5 // pred_region
        // Predicated region
        $region33: #{tpu_custom_call.1} parent=31 // pred_check
          %p181 = pneg %p34
        $region34: #{tpu_custom_call.1} parent=31 // pred_check_branch
          %183 = sbr.rel (%p181) target = $region36
        $region35: #{tpu_custom_call.1} parent=31 // pred_region
          %p184 = scmp.lt.s32.totalorder %s14, 1
          %s185 = scalar_select %p184, %s14, 1
          %s186 = smul.addr %s185, 8
          %s187 = smul.addr %s186, 8
          %s188 = scalar_lea.vmem %s0, %s187
        $region36: #{tpu_custom_call.1} parent=31 // pred_fallthru
          _
      $region32: #{tpu_custom_call.1} parent=5 // pred_fallthru
        _
      %p189 = scmp.le.s32.totalorder 1, %s14
      %p190 = scmp.lt.s32.totalorder %s14, 3
      %p191 = pnand %p189, %p190
      %p192 = pneg %p191
      // Predicated region
      $region37: #{tpu_custom_call.1} parent=5 // pred_check
        _
      $region38: #{tpu_custom_call.1} parent=5 // pred_check_branch
        %194 = sbr.rel (%p191) target = $region40
      $region39: #{tpu_custom_call.1} parent=5 // pred_region
        %s195 = ssub.s32 %s14, 1
        %p196 = scmp.lt.s32.totalorder %s19, 1
        %s197 = scalar_select %p196, %s19, 1
        %s198 = smul.addr %s197, 8
        %s199 = smul.addr %s198, 8
        %s200 = scalar_lea.vmem %s0, %s199
        %p201 = pneg %p40
        %p202 = pneg %p37
        %p203 = pneg %p61
        %p204 = pneg %p58
        %p205 = pneg %p82
        %p206 = pneg %p79
        %p207 = pneg %p103
        %p208 = pneg %p100
        %p209 = pneg %p124
        %p210 = pneg %p121
        %p211 = pneg %p150
        %p212 = pneg %p147
        %s213 = sand.u32 %s137, 1
        %s214 = scalar_lea.sflag [#allocation3], %s213
        %s215 = sand.u32 %s137, 1
        %s216 = smul.addr %s215, 64
        %s217 = scalar_lea.vmem [#allocation2], %s216
        %p218 = scmp.lt.s32.totalorder %s19, 1
        %s219 = scalar_select %p218, %s19, 1
        %s220 = smul.addr %s219, 8
        %s221 = smul.addr %s220, 8
        %s222 = scalar_lea.vmem %s0, %s221
        %v223 = vld [vmem:[%s222] sm:$0xff]
        %v224 = vld [vmem:[%s222 + $0x8] sm:$0xff]
        %v225 = vld [vmem:[%s222 + $0x10] sm:$0xff]
        %v226 = vld [vmem:[%s222 + $0x18] sm:$0xff]
        %v227 = vld [vmem:[%s222 + $0x20] sm:$0xff]
        %v228 = vld [vmem:[%s222 + $0x28] sm:$0xff]
        %v229 = vld [vmem:[%s222 + $0x30] sm:$0xff]
        %v230 = vld [vmem:[%s222 + $0x38] sm:$0xff]
        %v231 = vld [vmem:[%s1] sm:$0xf]
        %v232 = vld [vmem:[%s2] sm:$0xf]
        %v233 = vld [vmem:[%s3] sm:$0xff]
        %v234 = vld [vmem:[%s3 + $0x8] sm:$0xff]
        %v235 = vld [vmem:[%s3 + $0x10] sm:$0xff]
        %v236 = vld [vmem:[%s3 + $0x18] sm:$0xff]
        %v237 = vld [vmem:[%s3 + $0x20] sm:$0xff]
        %v238 = vld [vmem:[%s3 + $0x28] sm:$0xff]
        %v239 = vld [vmem:[%s3 + $0x30] sm:$0xff]
        %v240 = vld [vmem:[%s3 + $0x38] sm:$0xff]
        %v241 = vld [vmem:[%s4] sm:$0xff]
        %v242 = vld [vmem:[%s4 + $0x8] sm:$0xff]
        %v243 = vld [vmem:[%s4 + $0x10] sm:$0xff]
        %v244 = vld [vmem:[%s4 + $0x18] sm:$0xff]
        %v245 = vld [vmem:[%s4 + $0x20] sm:$0xff]
        %v246 = vld [vmem:[%s4 + $0x28] sm:$0xff]
        %v247 = vld [vmem:[%s4 + $0x30] sm:$0xff]
        %v248 = vld [vmem:[%s4 + $0x38] sm:$0xff]
        %249 = vadd.xlane.f32.xlu0 %v223
        %v250 = vpop.xlane.xlu0 %249
        %251 = vadd.xlane.f32.xlu0 %v224
        %v252 = vpop.xlane.xlu0 %251
        %253 = vadd.xlane.f32.xlu0 %v225
        %v254 = vpop.xlane.xlu0 %253
        %255 = vadd.xlane.f32.xlu0 %v226
        %v256 = vpop.xlane.xlu0 %255
        %257 = vadd.xlane.f32.xlu0 %v227
        %v258 = vpop.xlane.xlu0 %257
        %259 = vadd.xlane.f32.xlu0 %v228
        %v260 = vpop.xlane.xlu0 %259
        %261 = vadd.xlane.f32.xlu0 %v229
        %v262 = vpop.xlane.xlu0 %261
        %263 = vadd.xlane.f32.xlu0 %v230
        %v264 = vpop.xlane.xlu0 %263
        %v265 = vmul.f32 %v250, 0.015625
        %v266 = vmul.f32 %v252, 0.015625
        %v267 = vmul.f32 %v254, 0.015625
        %v268 = vmul.f32 %v256, 0.015625
        %v269 = vmul.f32 %v258, 0.015625
        %v270 = vmul.f32 %v260, 0.015625
        %v271 = vmul.f32 %v262, 0.015625
        %v272 = vmul.f32 %v264, 0.015625
        %vm273 = vcmask 523264
        %v275 = vsel %vm273, %v231, 0
        %277 = vmatprep.subr.mxu0 0.0
        %278 = vmatpush1.msra.mxu0 %v265
        %279 = vmatprep.subr.mxu0 0.0
        %280 = vmatpush1.msra.mxu0 %v266
        %281 = vmatprep.subr.mxu0 0.0
        %282 = vmatpush1.msra.mxu0 %v267
        %283 = vmatprep.subr.mxu0 0.0
        %284 = vmatpush1.msra.mxu0 %v268
        %285 = vmatprep.subr.mxu0 0.0
        %286 = vmatpush1.msra.mxu0 %v269
        %287 = vmatprep.subr.mxu0 0.0
        %288 = vmatpush1.msra.mxu0 %v270
        %289 = vmatprep.subr.mxu0 0.0
        %290 = vmatpush1.msra.mxu0 %v271
        %291 = vmatprep.subr.mxu0 0.0
        %292 = vmatpush1.msra.mxu0 %v272
        %293 = vmatprep.subr.mxu0 0.0
        %294 = vmatpush1.msra.mxu0 0.0
        %295 = vmatprep.subr.mxu0 0.0
        %296 = vmatpush1.msra.mxu0 0.0
        %297 = vmatprep.subr.mxu0 0.0
        %298 = vmatpush1.msra.mxu0 0.0
        %299 = vmatprep.subr.mxu0 0.0
        %300 = vmatpush1.msra.mxu0 0.0
        %301 = vmatprep.subr.mxu0 0.0
        %302 = vmatpush1.msra.mxu0 0.0
        %303 = vmatprep.subr.mxu0 0.0
        %304 = vmatpush1.msra.mxu0 0.0
        %305 = vmatprep.subr.mxu0 0.0
        %306 = vmatpush1.msra.mxu0 0.0
        %307 = vmatprep.subr.mxu0 0.0
        %308 = vmatpush1.msra.mxu0 0.0
        %309 = vmatprep.subr.mxu0 0.0
        %310 = vmatpush1.msra.mxu0 0.0
        %311 = vmatprep.subr.mxu0 0.0
        %312 = vmatpush1.msra.mxu0 0.0
        %313 = vmatprep.subr.mxu0 0.0
        %314 = vmatpush1.msra.mxu0 0.0
        %315 = vmatprep.subr.mxu0 0.0
        %316 = vmatpush1.msra.mxu0 0.0
        %317 = vmatprep.subr.mxu0 0.0
        %318 = vmatpush1.msra.mxu0 0.0
        %319 = vmatprep.subr.mxu0 0.0
        %320 = vmatpush1.msra.mxu0 0.0
        %321 = vmatprep.subr.mxu0 0.0
        %322 = vmatpush1.msra.mxu0 0.0
        %323 = vmatprep.subr.mxu0 0.0
        %324 = vmatpush1.msra.mxu0 0.0
        %325 = vmatprep.subr.mxu0 0.0
        %326 = vmatpush1.msra.mxu0 0.0
        %327 = vmatprep.subr.mxu0 0.0
        %328 = vmatpush1.msra.mxu0 0.0
        %329 = vmatprep.subr.mxu0 0.0
        %330 = vmatpush1.msra.mxu0 0.0
        %331 = vmatprep.subr.mxu0 0.0
        %332 = vmatpush1.msra.mxu0 0.0
        %333 = vmatprep.subr.mxu0 0.0
        %334 = vmatpush1.msra.mxu0 0.0
        %335 = vmatprep.subr.mxu0 0.0
        %336 = vmatpush1.msra.mxu0 0.0
        %337 = vmatprep.subr.mxu0 0.0
        %338 = vmatpush1.msra.mxu0 0.0
        %339 = vmatprep.subr.mxu0 0.0
        %340 = vmatpush1.msra.mxu0 0.0
        %341 = vmatprep.mubr.f32.mxu0 0.0
        %342 = vmatmul.mubr.f32.gmra.mrb[0].mxu0 %v275
        %v343 = vpop.f32.mrb[0].mxu0
        %v344 = vadd.f32 %v232, %v343
        %v345 = vpop.f32.mrb[0].mxu0
        %346 = vdwg.mxu0
        %v347 = vmax.f32 %v344, 0.0
        %vm348 = vcmask 31744
        %v350 = vsel %vm348, %v233, 0
        %v353 = vsel %vm348, %v234, 0
        %v356 = vsel %vm348, %v235, 0
        %v359 = vsel %vm348, %v236, 0
        %v362 = vsel %vm348, %v237, 0
        %v365 = vsel %vm348, %v238, 0
        %v368 = vsel %vm348, %v239, 0
        %v371 = vsel %vm348, %v240, 0
        %vm373 = vcmask 1043456
        %v375 = vsel %vm373, %v347, 0
        %377 = vmatprep.subr.mxu0 0.0
        %378 = vmatpush1.msra.mxu0 %v375
        %379 = vmatprep.subr.mxu0 0.0
        %380 = vmatpush1.msra.mxu0 0.0
        %381 = vmatprep.subr.mxu0 0.0
        %382 = vmatpush1.msra.mxu0 0.0
        %383 = vmatprep.subr.mxu0 0.0
        %384 = vmatpush1.msra.mxu0 0.0
        %385 = vmatprep.subr.mxu0 0.0
        %386 = vmatpush1.msra.mxu0 0.0
        %387 = vmatprep.subr.mxu0 0.0
        %388 = vmatpush1.msra.mxu0 0.0
        %389 = vmatprep.subr.mxu0 0.0
        %390 = vmatpush1.msra.mxu0 0.0
        %391 = vmatprep.subr.mxu0 0.0
        %392 = vmatpush1.msra.mxu0 0.0
        %393 = vmatprep.subr.mxu0 0.0
        %394 = vmatpush1.msra.mxu0 0.0
        %395 = vmatprep.subr.mxu0 0.0
        %396 = vmatpush1.msra.mxu0 0.0
        %397 = vmatprep.subr.mxu0 0.0
        %398 = vmatpush1.msra.mxu0 0.0
        %399 = vmatprep.subr.mxu0 0.0
        %400 = vmatpush1.msra.mxu0 0.0
        %401 = vmatprep.subr.mxu0 0.0
        %402 = vmatpush1.msra.mxu0 0.0
        %403 = vmatprep.subr.mxu0 0.0
        %404 = vmatpush1.msra.mxu0 0.0
        %405 = vmatprep.subr.mxu0 0.0
        %406 = vmatpush1.msra.mxu0 0.0
        %407 = vmatprep.subr.mxu0 0.0
        %408 = vmatpush1.msra.mxu0 0.0
        %409 = vmatprep.subr.mxu0 0.0
        %410 = vmatpush1.msra.mxu0 0.0
        %411 = vmatprep.subr.mxu0 0.0
        %412 = vmatpush1.msra.mxu0 0.0
        %413 = vmatprep.subr.mxu0 0.0
        %414 = vmatpush1.msra.mxu0 0.0
        %415 = vmatprep.subr.mxu0 0.0
        %416 = vmatpush1.msra.mxu0 0.0
        %417 = vmatprep.subr.mxu0 0.0
        %418 = vmatpush1.msra.mxu0 0.0
        %419 = vmatprep.subr.mxu0 0.0
        %420 = vmatpush1.msra.mxu0 0.0
        %421 = vmatprep.subr.mxu0 0.0
        %422 = vmatpush1.msra.mxu0 0.0
        %423 = vmatprep.subr.mxu0 0.0
        %424 = vmatpush1.msra.mxu0 0.0
        %425 = vmatprep.subr.mxu0 0.0
        %426 = vmatpush1.msra.mxu0 0.0
        %427 = vmatprep.subr.mxu0 0.0
        %428 = vmatpush1.msra.mxu0 0.0
        %429 = vmatprep.subr.mxu0 0.0
        %430 = vmatpush1.msra.mxu0 0.0
        %431 = vmatprep.subr.mxu0 0.0
        %432 = vmatpush1.msra.mxu0 0.0
        %433 = vmatprep.subr.mxu0 0.0
        %434 = vmatpush1.msra.mxu0 0.0
        %435 = vmatprep.subr.mxu0 0.0
        %436 = vmatpush1.msra.mxu0 0.0
        %437 = vmatprep.subr.mxu0 0.0
        %438 = vmatpush1.msra.mxu0 0.0
        %439 = vmatprep.subr.mxu0 0.0
        %440 = vmatpush1.msra.mxu0 0.0
        %441 = vmatprep.mubr.f32.mxu0 0.0
        %442 = vmatmul.mubr.f32.gmra.mrb[0].mxu0 %v350
        %v443 = vpop.f32.mrb[0].mxu0
        %v444 = vadd.f32 %v241, %v443
        %v445 = vpop.f32.mrb[0].mxu0
        %446 = vmatprep.mubr.f32.mxu0 0.0
        %447 = vmatmul.mubr.f32.gmra.mrb[0].mxu0 %v353
        %v448 = vpop.f32.mrb[0].mxu0
        %v449 = vadd.f32 %v242, %v448
        %v450 = vpop.f32.mrb[0].mxu0
        %451 = vmatprep.mubr.f32.mxu0 0.0
        %452 = vmatmul.mubr.f32.gmra.mrb[0].mxu0 %v356
        %v453 = vpop.f32.mrb[0].mxu0
        %v454 = vadd.f32 %v243, %v453
        %v455 = vpop.f32.mrb[0].mxu0
        %456 = vmatprep.mubr.f32.mxu0 0.0
        %457 = vmatmul.mubr.f32.gmra.mrb[0].mxu0 %v359
        %v458 = vpop.f32.mrb[0].mxu0
        %v459 = vadd.f32 %v244, %v458
        %v460 = vpop.f32.mrb[0].mxu0
        %461 = vmatprep.mubr.f32.mxu0 0.0
        %462 = vmatmul.mubr.f32.gmra.mrb[0].mxu0 %v362
        %v463 = vpop.f32.mrb[0].mxu0
        %v464 = vadd.f32 %v245, %v463
        %v465 = vpop.f32.mrb[0].mxu0
        %466 = vmatprep.mubr.f32.mxu0 0.0
        %467 = vmatmul.mubr.f32.gmra.mrb[0].mxu0 %v365
        %v468 = vpop.f32.mrb[0].mxu0
        %v469 = vadd.f32 %v246, %v468
        %v470 = vpop.f32.mrb[0].mxu0
        %471 = vmatprep.mubr.f32.mxu0 0.0
        %472 = vmatmul.mubr.f32.gmra.mrb[0].mxu0 %v368
        %v473 = vpop.f32.mrb[0].mxu0
        %v474 = vadd.f32 %v247, %v473
        %v475 = vpop.f32.mrb[0].mxu0
        %476 = vmatprep.mubr.f32.mxu0 0.0
        %477 = vmatmul.mubr.f32.gmra.mrb[0].mxu0 %v371
        %v478 = vpop.f32.mrb[0].mxu0
        %v479 = vadd.f32 %v248, %v478
        %v480 = vpop.f32.mrb[0].mxu0
        %481 = vdwg.mxu0
        %v482 = vxor.u32 %v444, 2147483648
        %v483 = vxor.u32 %v449, 2147483648
        %v484 = vxor.u32 %v454, 2147483648
        %v485 = vxor.u32 %v459, 2147483648
        %v486 = vxor.u32 %v464, 2147483648
        %v487 = vxor.u32 %v469, 2147483648
        %v488 = vxor.u32 %v474, 2147483648
        %v489 = vxor.u32 %v479, 2147483648
        %v490 = vmul.f32 %v482, 1.442695
        %v491 = vpow.pop %v490
        %v492 = vmul.f32 %v483, 1.442695
        %v493 = vpow.pop %v492
        %v494 = vmul.f32 %v484, 1.442695
        %v495 = vpow.pop %v494
        %v496 = vmul.f32 %v485, 1.442695
        %v497 = vpow.pop %v496
        %v498 = vmul.f32 %v486, 1.442695
        %v499 = vpow.pop %v498
        %v500 = vmul.f32 %v487, 1.442695
        %v501 = vpow.pop %v500
        %v502 = vmul.f32 %v488, 1.442695
        %v503 = vpow.pop %v502
        %v504 = vmul.f32 %v489, 1.442695
        %v505 = vpow.pop %v504
        %v506 = vadd.f32 %v491, 1.0
        %v507 = vadd.f32 %v493, 1.0
        %v508 = vadd.f32 %v495, 1.0
        %v509 = vadd.f32 %v497, 1.0
        %v510 = vadd.f32 %v499, 1.0
        %v511 = vadd.f32 %v501, 1.0
        %v512 = vadd.f32 %v503, 1.0
        %v513 = vadd.f32 %v505, 1.0
        %v514 = vrcp.pop %v506
        %v515 = vmul.f32 1.0, %v514
        %v516 = vrcp.pop %v507
        %v517 = vmul.f32 1.0, %v516
        %v518 = vrcp.pop %v508
        %v519 = vmul.f32 1.0, %v518
        %v520 = vrcp.pop %v509
        %v521 = vmul.f32 1.0, %v520
        %v522 = vrcp.pop %v510
        %v523 = vmul.f32 1.0, %v522
        %v524 = vrcp.pop %v511
        %v525 = vmul.f32 1.0, %v524
        %v526 = vrcp.pop %v512
        %v527 = vmul.f32 1.0, %v526
        %v528 = vrcp.pop %v513
        %v529 = vmul.f32 1.0, %v528
        %v530 = vmul.f32 %v265, %v515
        %v531 = vmul.f32 %v266, %v517
        %v532 = vmul.f32 %v267, %v519
        %v533 = vmul.f32 %v268, %v521
        %v534 = vmul.f32 %v269, %v523
        %v535 = vmul.f32 %v270, %v525
        %v536 = vmul.f32 %v271, %v527
        %v537 = vmul.f32 %v272, %v529
        %538 = vmatprep.subr.mxu0 0.0
        %539 = vmatpush1.msra.mxu0 %v530
        %540 = vmatprep.subr.mxu0 0.0
        %541 = vmatpush1.msra.mxu0 %v531
        %542 = vmatprep.subr.mxu0 0.0
        %543 = vmatpush1.msra.mxu0 %v532
        %544 = vmatprep.subr.mxu0 0.0
        %545 = vmatpush1.msra.mxu0 %v533
        %546 = vmatprep.subr.mxu0 0.0
        %547 = vmatpush1.msra.mxu0 %v534
        %548 = vmatprep.subr.mxu0 0.0
        %549 = vmatpush1.msra.mxu0 %v535
        %550 = vmatprep.subr.mxu0 0.0
        %551 = vmatpush1.msra.mxu0 %v536
        %552 = vmatprep.subr.mxu0 0.0
        %553 = vmatpush1.msra.mxu0 %v537
        %554 = vmatprep.subr.mxu0 0.0
        %555 = vmatpush1.msra.mxu0 0.0
        %556 = vmatprep.subr.mxu0 0.0
        %557 = vmatpush1.msra.mxu0 0.0
        %558 = vmatprep.subr.mxu0 0.0
        %559 = vmatpush1.msra.mxu0 0.0
        %560 = vmatprep.subr.mxu0 0.0
        %561 = vmatpush1.msra.mxu0 0.0
        %562 = vmatprep.subr.mxu0 0.0
        %563 = vmatpush1.msra.mxu0 0.0
        %564 = vmatprep.subr.mxu0 0.0
        %565 = vmatpush1.msra.mxu0 0.0
        %566 = vmatprep.subr.mxu0 0.0
        %567 = vmatpush1.msra.mxu0 0.0
        %568 = vmatprep.subr.mxu0 0.0
        %569 = vmatpush1.msra.mxu0 0.0
        %570 = vmatprep.subr.mxu0 0.0
        %571 = vmatpush1.msra.mxu0 0.0
        %572 = vmatprep.subr.mxu0 0.0
        %573 = vmatpush1.msra.mxu0 0.0
        %574 = vmatprep.subr.mxu0 0.0
        %575 = vmatpush1.msra.mxu0 0.0
        %576 = vmatprep.subr.mxu0 0.0
        %577 = vmatpush1.msra.mxu0 0.0
        %578 = vmatprep.subr.mxu0 0.0
        %579 = vmatpush1.msra.mxu0 0.0
        %580 = vmatprep.subr.mxu0 0.0
        %581 = vmatpush1.msra.mxu0 0.0
        %582 = vmatprep.subr.mxu0 0.0
        %583 = vmatpush1.msra.mxu0 0.0
        %584 = vmatprep.subr.mxu0 0.0
        %585 = vmatpush1.msra.mxu0 0.0
        %586 = vmatprep.subr.mxu0 0.0
        %587 = vmatpush1.msra.mxu0 0.0
        %588 = vmatprep.subr.mxu0 0.0
        %589 = vmatpush1.msra.mxu0 0.0
        %590 = vmatprep.subr.mxu0 0.0
        %591 = vmatpush1.msra.mxu0 0.0
        %592 = vmatprep.subr.mxu0 0.0
        %593 = vmatpush1.msra.mxu0 0.0
        %594 = vmatprep.subr.mxu0 0.0
        %595 = vmatpush1.msra.mxu0 0.0
        %596 = vmatprep.subr.mxu0 0.0
        %597 = vmatpush1.msra.mxu0 0.0
        %598 = vmatprep.subr.mxu0 0.0
        %599 = vmatpush1.msra.mxu0 0.0
        %600 = vmatprep.subr.mxu0 0.0
        %601 = vmatpush1.msra.mxu0 0.0
        %602 = vmatprep.mubr.f32.mxu0 0.0
        %603 = vmatmul.mubr.f32.gmra.mrb[0].mxu0 %v275
        %v604 = vpop.f32.mrb[0].mxu0
        %v605 = vadd.f32 %v232, %v604
        %v606 = vpop.f32.mrb[0].mxu0
        %607 = vdwg.mxu0
        %v608 = vmax.f32 %v605, 0.0
        %v610 = vsel %vm373, %v608, 0
        %612 = vmatprep.subr.mxu0 0.0
        %613 = vmatpush1.msra.mxu0 %v610
        %614 = vmatprep.subr.mxu0 0.0
        %615 = vmatpush1.msra.mxu0 0.0
        %616 = vmatprep.subr.mxu0 0.0
        %617 = vmatpush1.msra.mxu0 0.0
        %618 = vmatprep.subr.mxu0 0.0
        %619 = vmatpush1.msra.mxu0 0.0
        %620 = vmatprep.subr.mxu0 0.0
        %621 = vmatpush1.msra.mxu0 0.0
        %622 = vmatprep.subr.mxu0 0.0
        %623 = vmatpush1.msra.mxu0 0.0
        %624 = vmatprep.subr.mxu0 0.0
        %625 = vmatpush1.msra.mxu0 0.0
        %626 = vmatprep.subr.mxu0 0.0
        %627 = vmatpush1.msra.mxu0 0.0
        %628 = vmatprep.subr.mxu0 0.0
        %629 = vmatpush1.msra.mxu0 0.0
        %630 = vmatprep.subr.mxu0 0.0
        %631 = vmatpush1.msra.mxu0 0.0
        %632 = vmatprep.subr.mxu0 0.0
        %633 = vmatpush1.msra.mxu0 0.0
        %634 = vmatprep.subr.mxu0 0.0
        %635 = vmatpush1.msra.mxu0 0.0
        %636 = vmatprep.subr.mxu0 0.0
        %637 = vmatpush1.msra.mxu0 0.0
        %638 = vmatprep.subr.mxu0 0.0
        %639 = vmatpush1.msra.mxu0 0.0
        %640 = vmatprep.subr.mxu0 0.0
        %641 = vmatpush1.msra.mxu0 0.0
        %642 = vmatprep.subr.mxu0 0.0
        %643 = vmatpush1.msra.mxu0 0.0
        %644 = vmatprep.subr.mxu0 0.0
        %645 = vmatpush1.msra.mxu0 0.0
        %646 = vmatprep.subr.mxu0 0.0
        %647 = vmatpush1.msra.mxu0 0.0
        %648 = vmatprep.subr.mxu0 0.0
        %649 = vmatpush1.msra.mxu0 0.0
        %650 = vmatprep.subr.mxu0 0.0
        %651 = vmatpush1.msra.mxu0 0.0
        %652 = vmatprep.subr.mxu0 0.0
        %653 = vmatpush1.msra.mxu0 0.0
        %654 = vmatprep.subr.mxu0 0.0
        %655 = vmatpush1.msra.mxu0 0.0
        %656 = vmatprep.subr.mxu0 0.0
        %657 = vmatpush1.msra.mxu0 0.0
        %658 = vmatprep.subr.mxu0 0.0
        %659 = vmatpush1.msra.mxu0 0.0
        %660 = vmatprep.subr.mxu0 0.0
        %661 = vmatpush1.msra.mxu0 0.0
        %662 = vmatprep.subr.mxu0 0.0
        %663 = vmatpush1.msra.mxu0 0.0
        %664 = vmatprep.subr.mxu0 0.0
        %665 = vmatpush1.msra.mxu0 0.0
        %666 = vmatprep.subr.mxu0 0.0
        %667 = vmatpush1.msra.mxu0 0.0
        %668 = vmatprep.subr.mxu0 0.0
        %669 = vmatpush1.msra.mxu0 0.0
        %670 = vmatprep.subr.mxu0 0.0
        %671 = vmatpush1.msra.mxu0 0.0
        %672 = vmatprep.subr.mxu0 0.0
        %673 = vmatpush1.msra.mxu0 0.0
        %674 = vmatprep.subr.mxu0 0.0
        %675 = vmatpush1.msra.mxu0 0.0
        %676 = vmatprep.mubr.f32.mxu0 0.0
        %677 = vmatmul.mubr.f32.gmra.mrb[0].mxu0 %v350
        %v678 = vpop.f32.mrb[0].mxu0
        %v679 = vadd.f32 %v241, %v678
        %v680 = vpop.f32.mrb[0].mxu0
        %681 = vmatprep.mubr.f32.mxu0 0.0
        %682 = vmatmul.mubr.f32.gmra.mrb[0].mxu0 %v353
        %v683 = vpop.f32.mrb[0].mxu0
        %v684 = vadd.f32 %v242, %v683
        %v685 = vpop.f32.mrb[0].mxu0
        %686 = vmatprep.mubr.f32.mxu0 0.0
        %687 = vmatmul.mubr.f32.gmra.mrb[0].mxu0 %v356
        %v688 = vpop.f32.mrb[0].mxu0
        %v689 = vadd.f32 %v243, %v688
        %v690 = vpop.f32.mrb[0].mxu0
        %691 = vmatprep.mubr.f32.mxu0 0.0
        %692 = vmatmul.mubr.f32.gmra.mrb[0].mxu0 %v359
        %v693 = vpop.f32.mrb[0].mxu0
        %v694 = vadd.f32 %v244, %v693
        %v695 = vpop.f32.mrb[0].mxu0
        %696 = vmatprep.mubr.f32.mxu0 0.0
        %697 = vmatmul.mubr.f32.gmra.mrb[0].mxu0 %v362
        %v698 = vpop.f32.mrb[0].mxu0
        %v699 = vadd.f32 %v245, %v698
        %v700 = vpop.f32.mrb[0].mxu0
        %701 = vmatprep.mubr.f32.mxu0 0.0
        %702 = vmatmul.mubr.f32.gmra.mrb[0].mxu0 %v365
        %v703 = vpop.f32.mrb[0].mxu0
        %v704 = vadd.f32 %v246, %v703
        %v705 = vpop.f32.mrb[0].mxu0
        %706 = vmatprep.mubr.f32.mxu0 0.0
        %707 = vmatmul.mubr.f32.gmra.mrb[0].mxu0 %v368
        %v708 = vpop.f32.mrb[0].mxu0
        %v709 = vadd.f32 %v247, %v708
        %v710 = vpop.f32.mrb[0].mxu0
        %711 = vmatprep.mubr.f32.mxu0 0.0
        %712 = vmatmul.mubr.f32.gmra.mrb[0].mxu0 %v371
        %v713 = vpop.f32.mrb[0].mxu0
        %v714 = vadd.f32 %v248, %v713
        %v715 = vpop.f32.mrb[0].mxu0
        %716 = vdwg.mxu0
        %v717 = vxor.u32 %v679, 2147483648
        %v718 = vxor.u32 %v684, 2147483648
        %v719 = vxor.u32 %v689, 2147483648
        %v720 = vxor.u32 %v694, 2147483648
        %v721 = vxor.u32 %v699, 2147483648
        %v722 = vxor.u32 %v704, 2147483648
        %v723 = vxor.u32 %v709, 2147483648
        %v724 = vxor.u32 %v714, 2147483648
        %v725 = vmul.f32 %v717, 1.442695
        %v726 = vpow.pop %v725
        %v727 = vmul.f32 %v718, 1.442695
        %v728 = vpow.pop %v727
        %v729 = vmul.f32 %v719, 1.442695
        %v730 = vpow.pop %v729
        %v731 = vmul.f32 %v720, 1.442695
        %v732 = vpow.pop %v731
        %v733 = vmul.f32 %v721, 1.442695
        %v734 = vpow.pop %v733
        %v735 = vmul.f32 %v722, 1.442695
        %v736 = vpow.pop %v735
        %v737 = vmul.f32 %v723, 1.442695
        %v738 = vpow.pop %v737
        %v739 = vmul.f32 %v724, 1.442695
        %v740 = vpow.pop %v739
        %v741 = vadd.f32 %v726, 1.0
        %v742 = vadd.f32 %v728, 1.0
        %v743 = vadd.f32 %v730, 1.0
        %v744 = vadd.f32 %v732, 1.0
        %v745 = vadd.f32 %v734, 1.0
        %v746 = vadd.f32 %v736, 1.0
        %v747 = vadd.f32 %v738, 1.0
        %v748 = vadd.f32 %v740, 1.0
        %v749 = vrcp.pop %v741
        %v750 = vmul.f32 1.0, %v749
        %v751 = vrcp.pop %v742
        %v752 = vmul.f32 1.0, %v751
        %v753 = vrcp.pop %v743
        %v754 = vmul.f32 1.0, %v753
        %v755 = vrcp.pop %v744
        %v756 = vmul.f32 1.0, %v755
        %v757 = vrcp.pop %v745
        %v758 = vmul.f32 1.0, %v757
        %v759 = vrcp.pop %v746
        %v760 = vmul.f32 1.0, %v759
        %v761 = vrcp.pop %v747
        %v762 = vmul.f32 1.0, %v761
        %v763 = vrcp.pop %v748
        %v764 = vmul.f32 1.0, %v763
        %v765 = vmul.f32 %v515, %v750
        %v766 = vmul.f32 %v517, %v752
        %v767 = vmul.f32 %v519, %v754
        %v768 = vmul.f32 %v521, %v756
        %v769 = vmul.f32 %v523, %v758
        %v770 = vmul.f32 %v525, %v760
        %v771 = vmul.f32 %v527, %v762
        %v772 = vmul.f32 %v529, %v764
        %v773 = vmul.f32 %v530, %v750
        %v774 = vmul.f32 %v531, %v752
        %v775 = vmul.f32 %v532, %v754
        %v776 = vmul.f32 %v533, %v756
        %v777 = vmul.f32 %v534, %v758
        %v778 = vmul.f32 %v535, %v760
        %v779 = vmul.f32 %v536, %v762
        %v780 = vmul.f32 %v537, %v764
        %781 = vmatprep.subr.mxu0 0.0
        %782 = vmatpush1.msra.mxu0 %v773
        %783 = vmatprep.subr.mxu0 0.0
        %784 = vmatpush1.msra.mxu0 %v774
        %785 = vmatprep.subr.mxu0 0.0
        %786 = vmatpush1.msra.mxu0 %v775
        %787 = vmatprep.subr.mxu0 0.0
        %788 = vmatpush1.msra.mxu0 %v776
        %789 = vmatprep.subr.mxu0 0.0
        %790 = vmatpush1.msra.mxu0 %v777
        %791 = vmatprep.subr.mxu0 0.0
        %792 = vmatpush1.msra.mxu0 %v778
        %793 = vmatprep.subr.mxu0 0.0
        %794 = vmatpush1.msra.mxu0 %v779
        %795 = vmatprep.subr.mxu0 0.0
        %796 = vmatpush1.msra.mxu0 %v780
        %797 = vmatprep.subr.mxu0 0.0
        %798 = vmatpush1.msra.mxu0 0.0
        %799 = vmatprep.subr.mxu0 0.0
        %800 = vmatpush1.msra.mxu0 0.0
        %801 = vmatprep.subr.mxu0 0.0
        %802 = vmatpush1.msra.mxu0 0.0
        %803 = vmatprep.subr.mxu0 0.0
        %804 = vmatpush1.msra.mxu0 0.0
        %805 = vmatprep.subr.mxu0 0.0
        %806 = vmatpush1.msra.mxu0 0.0
        %807 = vmatprep.subr.mxu0 0.0
        %808 = vmatpush1.msra.mxu0 0.0
        %809 = vmatprep.subr.mxu0 0.0
        %810 = vmatpush1.msra.mxu0 0.0
        %811 = vmatprep.subr.mxu0 0.0
        %812 = vmatpush1.msra.mxu0 0.0
        %813 = vmatprep.subr.mxu0 0.0
        %814 = vmatpush1.msra.mxu0 0.0
        %815 = vmatprep.subr.mxu0 0.0
        %816 = vmatpush1.msra.mxu0 0.0
        %817 = vmatprep.subr.mxu0 0.0
        %818 = vmatpush1.msra.mxu0 0.0
        %819 = vmatprep.subr.mxu0 0.0
        %820 = vmatpush1.msra.mxu0 0.0
        %821 = vmatprep.subr.mxu0 0.0
        %822 = vmatpush1.msra.mxu0 0.0
        %823 = vmatprep.subr.mxu0 0.0
        %824 = vmatpush1.msra.mxu0 0.0
        %825 = vmatprep.subr.mxu0 0.0
        %826 = vmatpush1.msra.mxu0 0.0
        %827 = vmatprep.subr.mxu0 0.0
        %828 = vmatpush1.msra.mxu0 0.0
        %829 = vmatprep.subr.mxu0 0.0
        %830 = vmatpush1.msra.mxu0 0.0
        %831 = vmatprep.subr.mxu0 0.0
        %832 = vmatpush1.msra.mxu0 0.0
        %833 = vmatprep.subr.mxu0 0.0
        %834 = vmatpush1.msra.mxu0 0.0
        %835 = vmatprep.subr.mxu0 0.0
        %836 = vmatpush1.msra.mxu0 0.0
        %837 = vmatprep.subr.mxu0 0.0
        %838 = vmatpush1.msra.mxu0 0.0
        %839 = vmatprep.subr.mxu0 0.0
        %840 = vmatpush1.msra.mxu0 0.0
        %841 = vmatprep.subr.mxu0 0.0
        %842 = vmatpush1.msra.mxu0 0.0
        %843 = vmatprep.subr.mxu0 0.0
        %844 = vmatpush1.msra.mxu0 0.0
        %845 = vmatprep.mubr.f32.mxu0 0.0
        %846 = vmatmul.mubr.f32.gmra.mrb[0].mxu0 %v275
        %v847 = vpop.f32.mrb[0].mxu0
        %v848 = vadd.f32 %v232, %v847
        %v849 = vpop.f32.mrb[0].mxu0
        %850 = vdwg.mxu0
        %v851 = vmax.f32 %v848, 0.0
        %v853 = vsel %vm373, %v851, 0
        %855 = vmatprep.subr.mxu0 0.0
        %856 = vmatpush1.msra.mxu0 %v853
        %857 = vmatprep.subr.mxu0 0.0
        %858 = vmatpush1.msra.mxu0 0.0
        %859 = vmatprep.subr.mxu0 0.0
        %860 = vmatpush1.msra.mxu0 0.0
        %861 = vmatprep.subr.mxu0 0.0
        %862 = vmatpush1.msra.mxu0 0.0
        %863 = vmatprep.subr.mxu0 0.0
        %864 = vmatpush1.msra.mxu0 0.0
        %865 = vmatprep.subr.mxu0 0.0
        %866 = vmatpush1.msra.mxu0 0.0
        %867 = vmatprep.subr.mxu0 0.0
        %868 = vmatpush1.msra.mxu0 0.0
        %869 = vmatprep.subr.mxu0 0.0
        %870 = vmatpush1.msra.mxu0 0.0
        %871 = vmatprep.subr.mxu0 0.0
        %872 = vmatpush1.msra.mxu0 0.0
        %873 = vmatprep.subr.mxu0 0.0
        %874 = vmatpush1.msra.mxu0 0.0
        %875 = vmatprep.subr.mxu0 0.0
        %876 = vmatpush1.msra.mxu0 0.0
        %877 = vmatprep.subr.mxu0 0.0
        %878 = vmatpush1.msra.mxu0 0.0
        %879 = vmatprep.subr.mxu0 0.0
        %880 = vmatpush1.msra.mxu0 0.0
        %881 = vmatprep.subr.mxu0 0.0
        %882 = vmatpush1.msra.mxu0 0.0
        %883 = vmatprep.subr.mxu0 0.0
        %884 = vmatpush1.msra.mxu0 0.0
        %885 = vmatprep.subr.mxu0 0.0
        %886 = vmatpush1.msra.mxu0 0.0
        %887 = vmatprep.subr.mxu0 0.0
        %888 = vmatpush1.msra.mxu0 0.0
        %889 = vmatprep.subr.mxu0 0.0
        %890 = vmatpush1.msra.mxu0 0.0
        %891 = vmatprep.subr.mxu0 0.0
        %892 = vmatpush1.msra.mxu0 0.0
        %893 = vmatprep.subr.mxu0 0.0
        %894 = vmatpush1.msra.mxu0 0.0
        %895 = vmatprep.subr.mxu0 0.0
        %896 = vmatpush1.msra.mxu0 0.0
        %897 = vmatprep.subr.mxu0 0.0
        %898 = vmatpush1.msra.mxu0 0.0
        %899 = vmatprep.subr.mxu0 0.0
        %900 = vmatpush1.msra.mxu0 0.0
        %901 = vmatprep.subr.mxu0 0.0
        %902 = vmatpush1.msra.mxu0 0.0
        %903 = vmatprep.subr.mxu0 0.0
        %904 = vmatpush1.msra.mxu0 0.0
        %905 = vmatprep.subr.mxu0 0.0
        %906 = vmatpush1.msra.mxu0 0.0
        %907 = vmatprep.subr.mxu0 0.0
        %908 = vmatpush1.msra.mxu0 0.0
        %909 = vmatprep.subr.mxu0 0.0
        %910 = vmatpush1.msra.mxu0 0.0
        %911 = vmatprep.subr.mxu0 0.0
        %912 = vmatpush1.msra.mxu0 0.0
        %913 = vmatprep.subr.mxu0 0.0
        %914 = vmatpush1.msra.mxu0 0.0
        %915 = vmatprep.subr.mxu0 0.0
        %916 = vmatpush1.msra.mxu0 0.0
        %917 = vmatprep.subr.mxu0 0.0
        %918 = vmatpush1.msra.mxu0 0.0
        %919 = vmatprep.mubr.f32.mxu0 0.0
        %920 = vmatmul.mubr.f32.gmra.mrb[0].mxu0 %v350
        %v921 = vpop.f32.mrb[0].mxu0
        %v922 = vadd.f32 %v241, %v921
        %v923 = vpop.f32.mrb[0].mxu0
        %924 = vmatprep.mubr.f32.mxu0 0.0
        %925 = vmatmul.mubr.f32.gmra.mrb[0].mxu0 %v353
        %v926 = vpop.f32.mrb[0].mxu0
        %v927 = vadd.f32 %v242, %v926
        %v928 = vpop.f32.mrb[0].mxu0
        %929 = vmatprep.mubr.f32.mxu0 0.0
        %930 = vmatmul.mubr.f32.gmra.mrb[0].mxu0 %v356
        %v931 = vpop.f32.mrb[0].mxu0
        %v932 = vadd.f32 %v243, %v931
        %v933 = vpop.f32.mrb[0].mxu0
        %934 = vmatprep.mubr.f32.mxu0 0.0
        %935 = vmatmul.mubr.f32.gmra.mrb[0].mxu0 %v359
        %v936 = vpop.f32.mrb[0].mxu0
        %v937 = vadd.f32 %v244, %v936
        %v938 = vpop.f32.mrb[0].mxu0
        %939 = vmatprep.mubr.f32.mxu0 0.0
        %940 = vmatmul.mubr.f32.gmra.mrb[0].mxu0 %v362
        %v941 = vpop.f32.mrb[0].mxu0
        %v942 = vadd.f32 %v245, %v941
        %v943 = vpop.f32.mrb[0].mxu0
        %944 = vmatprep.mubr.f32.mxu0 0.0
        %945 = vmatmul.mubr.f32.gmra.mrb[0].mxu0 %v365
        %v946 = vpop.f32.mrb[0].mxu0
        %v947 = vadd.f32 %v246, %v946
        %v948 = vpop.f32.mrb[0].mxu0
        %949 = vmatprep.mubr.f32.mxu0 0.0
        %950 = vmatmul.mubr.f32.gmra.mrb[0].mxu0 %v368
        %v951 = vpop.f32.mrb[0].mxu0
        %v952 = vadd.f32 %v247, %v951
        %v953 = vpop.f32.mrb[0].mxu0
        %954 = vmatprep.mubr.f32.mxu0 0.0
        %955 = vmatmul.mubr.f32.gmra.mrb[0].mxu0 %v371
        %v956 = vpop.f32.mrb[0].mxu0
        %v957 = vadd.f32 %v248, %v956
        %v958 = vpop.f32.mrb[0].mxu0
        %959 = vdwg.mxu0
        %v960 = vxor.u32 %v922, 2147483648
        %v961 = vxor.u32 %v927, 2147483648
        %v962 = vxor.u32 %v932, 2147483648
        %v963 = vxor.u32 %v937, 2147483648
        %v964 = vxor.u32 %v942, 2147483648
        %v965 = vxor.u32 %v947, 2147483648
        %v966 = vxor.u32 %v952, 2147483648
        %v967 = vxor.u32 %v957, 2147483648
        %v968 = vmul.f32 %v960, 1.442695
        %v969 = vpow.pop %v968
        %v970 = vmul.f32 %v961, 1.442695
        %v971 = vpow.pop %v970
        %v972 = vmul.f32 %v962, 1.442695
        %v973 = vpow.pop %v972
        %v974 = vmul.f32 %v963, 1.442695
        %v975 = vpow.pop %v974
        %v976 = vmul.f32 %v964, 1.442695
        %v977 = vpow.pop %v976
        %v978 = vmul.f32 %v965, 1.442695
        %v979 = vpow.pop %v978
        %v980 = vmul.f32 %v966, 1.442695
        %v981 = vpow.pop %v980
        %v982 = vmul.f32 %v967, 1.442695
        %v983 = vpow.pop %v982
        %v984 = vadd.f32 %v969, 1.0
        %v985 = vadd.f32 %v971, 1.0
        %v986 = vadd.f32 %v973, 1.0
        %v987 = vadd.f32 %v975, 1.0
        %v988 = vadd.f32 %v977, 1.0
        %v989 = vadd.f32 %v979, 1.0
        %v990 = vadd.f32 %v981, 1.0
        %v991 = vadd.f32 %v983, 1.0
        %v992 = vrcp.pop %v984
        %v993 = vmul.f32 1.0, %v992
        %v994 = vrcp.pop %v985
        %v995 = vmul.f32 1.0, %v994
        %v996 = vrcp.pop %v986
        %v997 = vmul.f32 1.0, %v996
        %v998 = vrcp.pop %v987
        %v999 = vmul.f32 1.0, %v998
        %v1000 = vrcp.pop %v988
        %v1001 = vmul.f32 1.0, %v1000
        %v1002 = vrcp.pop %v989
        %v1003 = vmul.f32 1.0, %v1002
        %v1004 = vrcp.pop %v990
        %v1005 = vmul.f32 1.0, %v1004
        %v1006 = vrcp.pop %v991
        %v1007 = vmul.f32 1.0, %v1006
        %v1008 = vmul.f32 %v765, %v993
        %v1009 = vmul.f32 %v766, %v995
        %v1010 = vmul.f32 %v767, %v997
        %v1011 = vmul.f32 %v768, %v999
        %v1012 = vmul.f32 %v769, %v1001
        %v1013 = vmul.f32 %v770, %v1003
        %v1014 = vmul.f32 %v771, %v1005
        %v1015 = vmul.f32 %v772, %v1007
        %1017 = vset.pattern.permute.xlu0 0
        %1018 = vperm.xlu0 %1017, %v1008
        %v1019 = vpop.permute.xlu0 %1018
        %1022 = vset.pattern.permute.xlu0 0
        %1023 = vperm.xlu0 %1022, %v1009
        %v1024 = vpop.permute.xlu0 %1023
        %1027 = vset.pattern.permute.xlu0 0
        %1028 = vperm.xlu0 %1027, %v1010
        %v1029 = vpop.permute.xlu0 %1028
        %1032 = vset.pattern.permute.xlu0 0
        %1033 = vperm.xlu0 %1032, %v1011
        %v1034 = vpop.permute.xlu0 %1033
        %1037 = vset.pattern.permute.xlu0 0
        %1038 = vperm.xlu0 %1037, %v1012
        %v1039 = vpop.permute.xlu0 %1038
        %1042 = vset.pattern.permute.xlu0 0
        %1043 = vperm.xlu0 %1042, %v1013
        %v1044 = vpop.permute.xlu0 %1043
        %1047 = vset.pattern.permute.xlu0 0
        %1048 = vperm.xlu0 %1047, %v1014
        %v1049 = vpop.permute.xlu0 %1048
        %1052 = vset.pattern.permute.xlu0 0
        %1053 = vperm.xlu0 %1052, %v1015
        %v1054 = vpop.permute.xlu0 %1053
        %v1056 = vmul.f32 %v223, %v1019
        %v1057 = vmul.f32 %v224, %v1024
        %v1058 = vmul.f32 %v225, %v1029
        %v1059 = vmul.f32 %v226, %v1034
        %v1060 = vmul.f32 %v227, %v1039
        %v1061 = vmul.f32 %v228, %v1044
        %v1062 = vmul.f32 %v229, %v1049
        %v1063 = vmul.f32 %v230, %v1054
        %1064 = vst [vmem:[%s217] sm:$0xff] %v1056
        %1065 = vst [vmem:[%s217 + $0x8] sm:$0xff] %v1057
        %1066 = vst [vmem:[%s217 + $0x10] sm:$0xff] %v1058
        %1067 = vst [vmem:[%s217 + $0x18] sm:$0xff] %v1059
        %1068 = vst [vmem:[%s217 + $0x20] sm:$0xff] %v1060
        %1069 = vst [vmem:[%s217 + $0x28] sm:$0xff] %v1061
        %1070 = vst [vmem:[%s217 + $0x30] sm:$0xff] %v1062
        %1071 = vst [vmem:[%s217 + $0x38] sm:$0xff] %v1063
        %s1072 = sand.u32 %s137, 1
        %s1073 = scalar_lea.sflag [#allocation3], %s1072
        %s1074 = sand.u32 %s137, 1
        %s1075 = smul.addr %s1074, 64
        %s1076 = scalar_lea.vmem [#allocation2], %s1075
        // Predicated region
        $region41: #{tpu_custom_call.1} parent=39 // pred_check
          %p1077 = pneg %p147
        $region42: #{tpu_custom_call.1} parent=39 // pred_check_branch
          %1079 = sbr.rel (%p1077) target = $region44
        $region43: #{tpu_custom_call.1} parent=39 // pred_region
          %s1081 = ssub.s32 1024, 1024
          %1082 = vsyncadd %s1073, %s1081
          %s1083 = smul.addr %s19, 8
          %s1084 = smul.addr %s1083, 128
          %s1085 = scalar_lea.hbm %s5, %s1084
          %s1086 = sshll.u32 %s1076, 4
          %s1087 = int_to_ptr.vmem [resolvable:$true] %s1086
          %1092 = dma.vmem_to_hbm [thread:$0]  %s1087, 1024, %s1085, %s1073, 128, 128, 8
        $region44: #{tpu_custom_call.1} parent=39 // pred_fallthru
          _
      $region40: #{tpu_custom_call.1} parent=5 // pred_fallthru
        _
      %p1093 = scmp.le.s32.totalorder 2, %s14
      // Predicated region
      $region45: #{tpu_custom_call.1} parent=5 // pred_check
        %p1094 = pneg %p1093
      $region46: #{tpu_custom_call.1} parent=5 // pred_check_branch
        %1096 = sbr.rel (%p1094) target = $region48
      $region47: #{tpu_custom_call.1} parent=5 // pred_region
        %s1097 = ssub.s32 %s14, 2
        // Predicated region
        $region49: #{tpu_custom_call.1} parent=47 // pred_check
          %p1098 = pneg %p153
        $region50: #{tpu_custom_call.1} parent=47 // pred_check_branch
          %1100 = sbr.rel (%p1098) target = $region52
        $region51: #{tpu_custom_call.1} parent=47 // pred_region
          %s1101 = sand.u32 %s138, 1
          %s1102 = scalar_lea.sflag [#allocation3], %s1101
          %s1103 = sand.u32 %s138, 1
          %s1104 = smul.addr %s1103, 64
          %s1105 = scalar_lea.vmem [#allocation2], %s1104
          %1106 = dma.done %s1102, 1024
        $region52: #{tpu_custom_call.1} parent=47 // pred_fallthru
          _
      $region48: #{tpu_custom_call.1} parent=5 // pred_fallthru
        _
    $region6: #{tpu_custom_call.1} parent=1 // loop_footer
      %s18 = sadd.s32 1, %s14
    $region7: #{tpu_custom_call.1} parent=1 // loop_footer_branch
      %13 = sbr.rel target = $region3
    $region8: #{tpu_custom_call.1} parent=1 // loop_exit
      _
    %1107 = vsyncpa [#allocation3], 1
    %s1108 = scalar_lea.sflag [#allocation3], 1
    %1109 = vsyncpa %s1108, 1

</llo_original>
